<compile_context>
chip_gen: v6e
topology: v6e:2x2x1
jax: 0.10.0
libtpu: 0.0.40
codegen_flags: <defaults>
</compile_context>

<pallas_src>
import functools

import jax
import jax.numpy as jnp
from jax import lax
from jax.experimental import pallas as pl
from jax.experimental.pallas import tpu as pltpu


def _round_up(x, m):
    return ((x + m - 1) // m) * m


def _vmem_limit_bytes():
    """Scoped-VMEM limit: ~3/4 of physical VMEM (48 MiB on v7x's 64 MiB,
    96 MiB on v5e/v6e's 128 MiB) -- above the 16/32 MiB defaults but with
    headroom for compiler scratch."""
    try:
        cap = int(pltpu.get_tpu_info().vmem_capacity_bytes)
    except Exception:
        cap = 64 * 1024 * 1024
    return min(cap * 3 // 4, 96 * 1024 * 1024)


def _pick_block_rows(B, V, itemsize, vmem_budget, live_bytes_per_elem=None):
    """Batch rows per grid step.

    As large as the VMEM budget allows (big tiles amortize the ~0.35us/step
    overhead and keep DMAs >= ~1 MiB for the v5e HBM roofline), but split at
    least two ways when the batch permits so dimension_semantics=("parallel",)
    can shard the grid across both v7x TensorCores.
    """
    row_align = 16 if itemsize < 4 else 8            # bf16 needs (16,128) tiles
    if live_bytes_per_elem is None:
        # double-buffered input + f32 upcast + int32 lane iota + masks/selects
        live_bytes_per_elem = 2 * itemsize + 24
    per_row = max(1, V * live_bytes_per_elem)
    rows_cap = (vmem_budget // per_row) // row_align * row_align
    rows = max(row_align, min(512, rows_cap))
    if B >= 2 * row_align:
        # Guarantee >= 2 grid steps so both v7x TensorCores get work.
        rows = min(rows, _round_up(pl.cdiv(B, 2), row_align))
    if rows >= B:
        return B                                     # full-dim block is always legal
    return rows                                      # multiple of row_align


def _compiler_params():
    return pltpu.CompilerParams(
        dimension_semantics=("parallel",),
        vmem_limit_bytes=_vmem_limit_bytes(),
    )


def _lane_cumsum(x, lane):
    """Inclusive cumulative sum along the last (lane) axis.

    log2(V)-step Hillis-Steele scan: each step is one XLU roll plus a masked
    VPU add.  O(V log V) work, no V x V buffer.  `lane` is the hoisted
    (B, V) int32 lane iota (reused by the caller)."""
    _, V = x.shape
    c = x
    shift = 1
    while shift < V:
        rolled = pltpu.roll(c, shift, 1)             # rolled[i] = c[i - shift]
        c = c + jnp.where(lane >= shift, rolled, 0.0)
        shift *= 2
    return c


def _greedy_kernel(logits_ref, out_ref):
    """argmax(logits, -1) with NaN -> -100000.0, first-occurrence tie break.

    Accepts bf16 or f32 logits; math is done in f32 in-kernel."""
    B, V = logits_ref.shape
    logits = logits_ref[...].astype(jnp.float32)
    logits = jnp.where(jnp.isnan(logits), jnp.full_like(logits, -100000.0), logits)
    m = jnp.max(logits, axis=-1, keepdims=True)
    lane = lax.broadcasted_iota(jnp.int32, (B, V), 1)
    pos = jnp.min(jnp.where(logits == m, lane, V), axis=-1, keepdims=True)
    out_ref[...] = pos.astype(jnp.int32)


def _sampling_kernel(vals_ref, params_ref, out_ref, *, need_min_p_sampling):
    """top_k_top_p_min_p_sampling_from_probs on a pre-sorted candidate prefix.

    vals_ref   : (B, C) logits of the top-C candidates, rows sorted descending,
                 NaN already replaced in the wrapper.
    params_ref : (B, 8) f32 packed
                 [1/temperature, top_k, top_p, min_p, u, full_softmax_denom, 0, 0].
    out_ref    : (B, 1) i32 sampled *sorted rank*; the gather back to the
                 original token id is done by the caller on the top-k indices.
    """
    B, C = vals_ref.shape
    x = vals_ref[...].astype(jnp.float32)

    inv_temp = params_ref[:, 0:1]
    topk = params_ref[:, 1:2]
    topp = params_ref[:, 2:3]
    minp = params_ref[:, 3:4]
    u = params_ref[:, 4:5]
    denom = params_ref[:, 5:6]        # FULL-vocab softmax denominator (max-shifted)

    # logits.div_(temperatures) -> multiply by the exact reciprocal.
    x = x * inv_temp

    # Rows are sorted descending and NaN-free, so lane 0 holds the row max.
    # Un-normalized softmax: all later comparisons are rescaled by `denom`,
    # so no (B,C) normalization divide is needed.  e[:, 0] == 1.
    e = jnp.exp(x - x[:, 0:1])

    # Hoisted lane iota: reused by the scan, the top-k mask and the arg-min.
    lane = lax.broadcasted_iota(jnp.int32, (B, C), 1)

    # Inclusive cumulative sum along the candidate axis (log-step roll scan).
    csum = _lane_cumsum(e, lane)

    # top-k: keep ranks < top_k (prefix mask).
    keep = lane < topk.astype(jnp.int32)
    # top-p: keep where exclusive-cumsum <= top_p * full_denom (prefix mask).
    keep = jnp.logical_and(keep, (csum - e) <= topp * denom)
    if need_min_p_sampling:
        # threshold = probs_sort[:, 0] * min_p; in un-normalized space
        # e[:, 0] == 1, so the threshold is simply min_p (prefix mask).
        keep = jnp.logical_and(keep, e >= minp)
    filtered = jnp.where(keep, e, 0.0)

    # The combined mask is a prefix of the sorted row, so
    # cumsum(filtered) == min(cumsum(e), sum(filtered)) -- no second scan.
    total = jnp.sum(filtered, axis=-1, keepdims=True)
    cfilt = jnp.minimum(csum, total)

    # multinomial(filtered, 1) via inverse CDF (scale-invariant in `total`).
    threshold = u * total
    cond = cfilt > threshold
    pos = jnp.min(jnp.where(cond, lane, C), axis=-1, keepdims=True)    # first True
    # Clamp to the LAST KEPT rank so the result never escapes the keep set
    # (u == 1.0, or u*total rounding up to total in f32).  keep[…,0] is always
    # True (top_k >= 1, exclusive-cumsum 0 <= top_p, e[:,0]=1 >= min_p).
    num_keep = jnp.sum(keep.astype(jnp.int32), axis=-1, keepdims=True)
    pos = jnp.minimum(pos, num_keep - 1)
    out_ref[...] = pos.astype(jnp.int32)


def greedy_sample(logits, *, block_b=None):
    B, V = logits.shape
    itemsize = jnp.dtype(logits.dtype).itemsize
    if block_b is None:
        block_b = _pick_block_rows(B, V, itemsize, _vmem_limit_bytes())
    grid = (pl.cdiv(B, block_b),)
    out = pl.pallas_call(
        _greedy_kernel,
        out_shape=jax.ShapeDtypeStruct((B, 1), jnp.int32),
        grid=grid,
        in_specs=[pl.BlockSpec((block_b, V), lambda i: (i, 0))],
        out_specs=pl.BlockSpec((block_b, 1), lambda i: (i, 0)),
        compiler_params=_compiler_params(),
    )(logits)
    return out[:, 0]


def top_k_top_p_min_p_sample(logits, temperatures, top_ks, top_ps, min_ps, u,
                             *, need_min_p_sampling, max_candidates=1024,
                             block_b=None):
    B, V = logits.shape

    # NaN handling + candidate capping happen in the wrapper (fused XLA pass),
    # so the kernel only ever sees a clean, descending-sorted prefix.
    logits_f = logits.astype(jnp.float32)
    logits_f = jnp.where(jnp.isnan(logits_f),
                         jnp.full_like(logits_f, -100000.0), logits_f)

    # Candidate cap: multiple of 128 for lane-dense tiles (or the full vocab).
    # TODO(synk): if a row's top-p mass extends past the cap, the tail is
    #             truncated (standard serving-side approximation).
    if V <= max_candidates:
        C = V
    else:
        C = min(V, _round_up(max_candidates, 128))
    vals, order = lax.top_k(logits_f, C)              # descending values + indices
    order = order.astype(jnp.int32)

    # Clamp temperature away from 0 (greedy-coded rows use temperature == 0;
    # a tiny temperature degenerates to argmax as intended) and invert exactly.
    temp = jnp.maximum(temperatures.reshape(B, 1).astype(jnp.float32), 1e-6)
    inv_temp = 1.0 / temp

    # Full-vocab softmax denominator in max-shifted, temperature-scaled space.
    # One fused (B, V) pass keeps top-p semantics exact even with a capped C.
    m = vals[:, 0:1]
    full_denom = jnp.sum(jnp.exp((logits_f - m) * inv_temp),
                         axis=-1, keepdims=True)

    # top_ks round-trips through f32: exact for values < 2^24 (any real vocab).
    top_ks_f = jnp.clip(top_ks.reshape(B, 1), 1, C).astype(jnp.float32)
    params = jnp.concatenate(
        [
            inv_temp,
            top_ks_f,
            top_ps.reshape(B, 1).astype(jnp.float32),
            min_ps.reshape(B, 1).astype(jnp.float32),
            u.reshape(B, 1).astype(jnp.float32),
            full_denom,
            jnp.zeros((B, 2), jnp.float32),
        ],
        axis=1,
    )  # (B, 8) -- one packed per-row parameter DMA per grid step.

    # Stream the capped values in the caller's dtype (bf16 halves bytes).
    vals_in = vals.astype(logits.dtype)
    itemsize = jnp.dtype(vals_in.dtype).itemsize
    if block_b is None:
        block_b = _pick_block_rows(B, C, itemsize, _vmem_limit_bytes(),
                                   live_bytes_per_elem=2 * itemsize + 40)

    grid = (pl.cdiv(B, block_b),)
    kernel = functools.partial(_sampling_kernel,
                               need_min_p_sampling=need_min_p_sampling)
    pos = pl.pallas_call(
        kernel,
        out_shape=jax.ShapeDtypeStruct((B, 1), jnp.int32),
        grid=grid,
        in_specs=[
            pl.BlockSpec((block_b, C), lambda i: (i, 0)),   # sorted candidate logits
            pl.BlockSpec((block_b, 8), lambda i: (i, 0)),   # packed params
        ],
        out_specs=pl.BlockSpec((block_b, 1), lambda i: (i, 0)),
        compiler_params=_compiler_params(),
    )(vals_in, params)

    # Gather original token ids outside the kernel (no (B,V) int32 stream).
    token = jnp.take_along_axis(order, pos, axis=-1)
    return token[:, 0].astype(jnp.int32)


def sampler_forward(logits, temperatures, top_ks, top_ps, min_ps, u,
                    *, is_all_greedy, need_min_p_sampling, max_candidates=1024):
    """Pallas equivalent of Sampler.forward (pytorch sampling backend),
    returning batch_next_token_ids as int32."""
    if is_all_greedy:
        return greedy_sample(logits)
    return top_k_top_p_min_p_sample(
        logits, temperatures, top_ks, top_ps, min_ps, u,
        need_min_p_sampling=need_min_p_sampling, max_candidates=max_candidates)


if __name__ == "__main__":
    B, V = 8, 512
    key = jax.random.PRNGKey(0)
    k1, k2, k3, k4, k5, k6 = jax.random.split(key, 6)

    logits = jax.random.normal(k1, (B, V), dtype=jnp.float32) * 3.0
    temperatures = jax.random.uniform(k2, (B,), minval=0.5, maxval=1.5)
    top_ks = jax.random.randint(k3, (B,), 1, 64).astype(jnp.int32)
    top_ps = jax.random.uniform(k4, (B,), minval=0.7, maxval=1.0)
    min_ps = jax.random.uniform(k5, (B,), minval=0.0, maxval=0.2)
    u = jax.random.uniform(k6, (B,), dtype=jnp.float32)

    # Greedy path (is_all_greedy=True), f32 stream.
    greedy_ids = sampler_forward(
        logits, temperatures, top_ks, top_ps, min_ps, u,
        is_all_greedy=True, need_min_p_sampling=False)
    jax.block_until_ready(greedy_ids)
    assert greedy_ids.dtype == jnp.int32
    assert jnp.array_equal(greedy_ids, jnp.argmax(logits, -1).astype(jnp.int32))

    # Greedy path, bf16 stream (half the HBM bytes).
    logits_bf16 = logits.astype(jnp.bfloat16)
    greedy_bf16 = greedy_sample(logits_bf16)
    jax.block_until_ready(greedy_bf16)
    assert jnp.array_equal(
        greedy_bf16,
        jnp.argmax(logits_bf16.astype(jnp.float32), -1).astype(jnp.int32))

    order_ref = jnp.argsort(-logits, axis=-1)

    # Sampling path (top-k / top-p / min-p), candidate set uncapped (C == V).
    sampled_ids = sampler_forward(
        logits, temperatures, top_ks, top_ps, min_ps, u,
        is_all_greedy=False, need_min_p_sampling=True)
    jax.block_until_ready(sampled_ids)
    assert sampled_ids.dtype == jnp.int32
    assert bool(jnp.all((sampled_ids >= 0) & (sampled_ids < V)))
    rank_of_sampled = jnp.argmax(order_ref == sampled_ids[:, None], axis=-1)
    assert bool(jnp.all(rank_of_sampled < top_ks))

    # Sampling path with a capped candidate set (exercises the lax.top_k path).
    sampled_capped = top_k_top_p_min_p_sample(
        logits, temperatures, top_ks, top_ps, min_ps, u,
        need_min_p_sampling=True, max_candidates=256)
    jax.block_until_ready(sampled_capped)
    assert bool(jnp.all((sampled_capped >= 0) & (sampled_capped < V)))
    rank_capped = jnp.argmax(order_ref == sampled_capped[:, None], axis=-1)
    assert bool(jnp.all(rank_capped < top_ks))

    print("KERNEL_OK")
</pallas_src>

<mosaic_0001>
module attributes {stable_mosaic.version = 11 : i64} {
  func.func @_greedy_kernel(%arg0: i32, %arg1: memref<8x512xf32, #tpu.memory_space<vmem>>, %arg2: memref<8x1xi32, #tpu.memory_space<vmem>>) attributes {dimension_semantics = [#tpu.dimension_semantics<parallel>], iteration_bounds = array<i64: 1>, scalar_prefetch = 0 : i64, scratch_operands = 0 : i64, tpu.core_type = #tpu.core_type<tc>, window_params = [{transform_indices = @transform_0, window_bounds = array<i64: 8, 512>}, {transform_indices = @transform_1, window_bounds = array<i64: 8, 1>}]} {
    %c0 = arith.constant 0 : index
    %c0_0 = arith.constant 0 : index
    %0 = vector.load %arg1[%c0, %c0_0] : memref<8x512xf32, #tpu.memory_space<vmem>>, vector<8x512xf32>
    %1 = arith.cmpf one, %0, %0 : vector<8x512xf32>
    %cst = arith.constant -1.000000e+05 : f32
    %2 = vector.broadcast %cst : f32 to vector<8x512xf32>
    %3 = arith.select %1, %2, %0 : vector<8x512xi1>, vector<8x512xf32>
    %cst_1 = arith.constant dense<0xFF800000> : vector<8xf32>
    %4 = vector.multi_reduction <maximumf>, %3, %cst_1 [1] : vector<8x512xf32> to vector<8xf32>
    %5 = vector.shape_cast %4 : vector<8xf32> to vector<8x1xf32>
    %6 = tpu.iota {dimensions = array<i32: 1>} : vector<8x512xi32>
    %7 = vector.broadcast %5 : vector<8x1xf32> to vector<8x512xf32>
    %8 = arith.cmpf oeq, %3, %7 : vector<8x512xf32>
    %c512_i32 = arith.constant 512 : i32
    %9 = vector.broadcast %c512_i32 : i32 to vector<8x512xi32>
    %10 = arith.select %8, %6, %9 : vector<8x512xi1>, vector<8x512xi32>
    %cst_2 = arith.constant dense<2147483647> : vector<8xi32>
    %11 = vector.multi_reduction <minsi>, %10, %cst_2 [1] : vector<8x512xi32> to vector<8xi32>
    %12 = vector.shape_cast %11 : vector<8xi32> to vector<8x1xi32>
    %c0_3 = arith.constant 0 : index
    %c0_4 = arith.constant 0 : index
    %13 = vector.load %arg2[%c0_3, %c0_4] : memref<8x1xi32, #tpu.memory_space<vmem>>, vector<8x1xi32>
    tpu.vector_store %arg2[%c0_3, %c0_4], %12 {strides = array<i32>} : memref<8x1xi32, #tpu.memory_space<vmem>>, vector<8x1xi32>,
    return
  }
  func.func @transform_0(%arg0: i32) -> (i32, i32) {
    %c0_i32 = arith.constant 0 : i32
    %c0_i32_0 = arith.constant 0 : i32
    return %arg0, %c0_i32 : i32, i32
  }
  func.func @transform_1(%arg0: i32) -> (i32, i32) {
    %c0_i32 = arith.constant 0 : i32
    %c0_i32_0 = arith.constant 0 : i32
    return %arg0, %c0_i32 : i32, i32
  }
}

</mosaic_0001>

<llo_original>
// kernel: tpu_custom_call.1
$region0: #{tpu_custom_call.1}
  #allocation0 [shape = 'u32[]', space=smem, size = 0x4, offset = 0x4, fixed_abs, tag = 'smem constant byte address 0x4 - core index']
  #allocation1 [shape = 'u32[144,128]{1,0:T(1,128)}', space=vmem, size = 0x12000, scoped, tag = 'internal scratch']
  %s0 = inlined_call_operand.hbm [shape: f32[8,512], index: 0, kind: input, shape index: {}]
  %s1 = inlined_call_operand.vmem [shape: s32[8,1], index: 1, kind: output, shape index: {}]
  %s2 = sld [smem:[#allocation0]]
  $region18: #{tpu_custom_call.1} parent=0
    _
  %s4 = ssub.s32 1, %s2
  %s5 = scalar_select 0, %s4, %s2
  $region1: #{tpu_custom_call.1} parent=0
    #allocation2 [shape = 'u8[16384]{0}', space=vmem, size = 0x4000, scoped, tag = 'input window, operand 0, single buffered']
    #allocation3 [shape = 's32[1]{0}', space=sflag, size = 0x4, scoped, tag = 'scoped memory for tpu_custom_call.1']
    %6 = vsyncpa [#allocation3], 0
    // Predicated region
    $region2: #{tpu_custom_call.1} parent=1 // pred_check
      _
    $region3: #{tpu_custom_call.1} parent=1 // pred_check_branch
      %8 = sbr.rel (0) target = $region5
    $region4: #{tpu_custom_call.1} parent=1 // pred_region
      %s10 = ssub.s32 512, 512
      %11 = vsyncadd [#allocation3], %s10
      %s13 = sshll.u32 [#allocation2], 4
      %s14 = int_to_ptr.vmem [resolvable:$true] %s13
      %16 = dma.hbm_to_vmem [thread:$0]  %s0, 512, %s14, [#allocation3]
    $region5: #{tpu_custom_call.1} parent=1 // pred_fallthru
      _
    // Predicated region
    $region6: #{tpu_custom_call.1} parent=1 // pred_check
      _
    $region7: #{tpu_custom_call.1} parent=1 // pred_check_branch
      %18 = sbr.rel (0) target = $region9
    $region8: #{tpu_custom_call.1} parent=1 // pred_region
      %19 = dma.done [#allocation3], 512
    $region9: #{tpu_custom_call.1} parent=1 // pred_fallthru
      _
    %v20 = vld [vmem:[#allocation2] sm:$0xff]
    %v21 = vld [vmem:[#allocation2 + $0x8] sm:$0xff]
    %v22 = vld [vmem:[#allocation2 + $0x10] sm:$0xff]
    %v23 = vld [vmem:[#allocation2 + $0x18] sm:$0xff]
    %vm24 = vcmp.ne.f32.partialorder %v20, %v20
    %vm25 = vcmp.ne.f32.partialorder %v21, %v21
    %vm26 = vcmp.ne.f32.partialorder %v22, %v22
    %vm27 = vcmp.ne.f32.partialorder %v23, %v23
    %v28 = vsel %vm24, -100000.0, %v20
    %v29 = vsel %vm25, -100000.0, %v21
    %v30 = vsel %vm26, -100000.0, %v22
    %v31 = vsel %vm27, -100000.0, %v23
    %v32 = vmax.f32 %v28, %v29
    %v33 = vmax.f32 %v30, %v31
    %v34 = vmax.f32 %v32, %v33
    %35 = vmax.xlane.f32.xlu0 %v34
    %v36 = vpop.xlane.xlu0 %35
    %v37 = vlaneseq
    %v38 = vand.u32 %v37, 127
    %v39 = vadd.s32 %v38, 128
    %v40 = vadd.s32 %v38, 256
    %v41 = vadd.s32 %v38, 384
    %vm42 = vcmp.eq.f32.partialorder %v28, %v36
    %vm43 = vcmp.eq.f32.partialorder %v29, %v36
    %vm44 = vcmp.eq.f32.partialorder %v30, %v36
    %vm45 = vcmp.eq.f32.partialorder %v31, %v36
    %v46 = vsel %vm42, %v38, 512
    %v47 = vsel %vm43, %v39, 512
    %v48 = vsel %vm44, %v40, 512
    %v49 = vsel %vm45, %v41, 512
    %vm50 = vcmp.lt.s32.totalorder %v46, %v47
    %v51 = vsel %vm50, %v46, %v47
    %vm52 = vcmp.lt.s32.totalorder %v48, %v49
    %v53 = vsel %vm52, %v48, %v49
    %vm54 = vcmp.lt.s32.totalorder %v51, %v53
    %v55 = vsel %vm54, %v51, %v53
    %v56 = vand.u32 %v55, 65535
    %v57 = vshra.s32 %v55, 16
    %v58 = vcvt.s32.f32 %v56
    %v59 = vcvt.s32.f32 %v57
    %60 = vmin.xlane.f32.xlu0 %v59
    %v61 = vpop.xlane.xlu0 %60
    %vm62 = vcmp.eq.f32.partialorder %v59, %v61
    %v63 = vsel %vm62, %v58, inf
    %64 = vmin.xlane.f32.xlu0 %v63
    %v65 = vpop.xlane.xlu0 %64
    %v66 = vcvt.f32.s32 %v65
    %v67 = vcvt.f32.s32 %v61
    %v68 = vshll.u32 %v67, 16
    %v69 = vadd.s32 %v68, %v66
    %vm70 = vcmask 7168
    %71 = vst.msk [vmem:[%s1] sm:$0xff] %vm70, %v69
    // Predicated region
    $region10: #{tpu_custom_call.1} parent=1 // pred_check
      _
    $region11: #{tpu_custom_call.1} parent=1 // pred_check_branch
      %73 = sbr.rel (0) target = $region13
    $region12: #{tpu_custom_call.1} parent=1 // pred_region
      _
    $region13: #{tpu_custom_call.1} parent=1 // pred_fallthru
      _
    // Predicated region
    $region14: #{tpu_custom_call.1} parent=1 // pred_check
      _
    $region15: #{tpu_custom_call.1} parent=1 // pred_check_branch
      %75 = sbr.rel (0) target = $region17
    $region16: #{tpu_custom_call.1} parent=1 // pred_region
      _
    $region17: #{tpu_custom_call.1} parent=1 // pred_fallthru
      _
    %76 = vsyncpa [#allocation3], 1

</llo_original>
